<compile_context>
chip_gen: v5e
topology: v5e:2x2
jax: 0.10.0
libtpu: 0.0.40
codegen_flags: <defaults>
</compile_context>

<pallas_src>
import functools

import jax
import jax.numpy as jnp
from jax.experimental import pallas as pl
from jax.experimental.pallas import tpu as pltpu


def apply_custom_relu(x, leak=None, sub=None):
    """Elementwise CustomReLU epilogue.

    Pure jnp; call this on an accumulator tile inside a producing kernel
    (matmul/conv epilogue) to fuse the activation and avoid a dedicated
    2*N-byte HBM pass. Also used as the body of the standalone kernel below.
    """
    if leak is None:
        y = jnp.maximum(x, jnp.zeros_like(x))
    else:
        # leaky_relu(x) = x if x >= 0 else leak * x
        y = jnp.where(x >= 0, x, x * jnp.asarray(leak, x.dtype))
    if sub is not None:
        y = y - jnp.asarray(sub, x.dtype)
    return y


def _custom_relu_kernel(x_ref, o_ref, *, leak, sub):
    o_ref[...] = apply_custom_relu(x_ref[...], leak=leak, sub=sub)


def _round_up(a, m):
    return ((a + m - 1) // m) * m


def _tpu_budgets():
    """Per-TensorCore VMEM capacity and TensorCore count (robust to query failure)."""
    vmem = None
    num_tc = None
    try:
        info = pltpu.get_tpu_info()
        vmem = int(info.vmem_capacity_bytes)
        for attr in ("num_cores", "num_tensorcores", "tensorcore_count"):
            v = getattr(info, attr, None)
            if v:
                num_tc = int(v)
                break
    except Exception:
        pass
    if vmem is None:
        vmem = 64 * 1024 * 1024  # conservative: v7x per-TC VMEM
    if num_tc is None:
        # Heuristic: 64 MiB per-TC VMEM => v7x (2 TCs); 128 MiB => v5e/v6e (1 TC).
        num_tc = 2 if vmem <= 96 * 1024 * 1024 else 1
    return vmem, num_tc


def _pick_block_rows(rows, lane, itemsize, sub_mult, target_block_bytes, num_tc):
    """Choose block rows: big blocks, near-even small grids, multi-TC aware."""
    elems_per_block = max(1, target_block_bytes // (itemsize * lane))
    br = max(sub_mult, (elems_per_block // sub_mult) * sub_mult)

    if br >= rows:
        # Whole tensor fits in one block.
        total_bytes = rows * lane * itemsize
        if num_tc > 1 and rows >= num_tc * sub_mult and total_bytes >= (2 << 20):
            # Split into num_tc near-equal steps so both v7x TensorCores stream.
            br = _round_up(pl.cdiv(rows, num_tc), sub_mult)
        else:
            # Single full-extent block (always a legal block shape); on 1-TC chips
            # an extra grid step would only add per-step overhead.
            br = rows
        return br

    steps = pl.cdiv(rows, br)
    if steps <= 8:
        # Small grid: rebalance to near-equal blocks; on multi-TC chips round the
        # step count up to a multiple of num_tc so the cores get even work
        # (e.g. 288 rows: 256+32 -> 144+144 on v7x).
        if num_tc > 1:
            steps = num_tc * pl.cdiv(steps, num_tc)
        br = max(sub_mult, _round_up(pl.cdiv(rows, steps), sub_mult))
    return br


def custom_relu(x, leak=None, sub=None, *, target_block_bytes=None):
    """Pallas implementation of CustomReLU.forward.

    leak/sub are static Python scalars (fixed at module construction in the
    PyTorch reference).
    """
    orig_shape = x.shape
    dtype = x.dtype
    n = x.size
    itemsize = jnp.dtype(dtype).itemsize
    # dtype-dependent minimum sublane multiple for the second-to-last block dim
    sub_mult = {4: 8, 2: 16, 1: 32}.get(itemsize, 8)

    vmem_cap, num_tc = _tpu_budgets()
    if target_block_bytes is None:
        # ~8 MiB blocks on v7x (64 MiB VMEM), ~16 MiB on v5e/v6e (128 MiB VMEM).
        target_block_bytes = max(1 << 20, vmem_cap // 8)
    # in + out, double-buffered = 4x block = vmem_cap/2; keep the limit above that
    # but under physical capacity. Must stay explicit: v5e's default scoped VMEM
    # is only 16 MiB.
    vmem_limit_bytes = int(vmem_cap * 3 // 4)

    # Pick the widest lane dimension (multiple of 128) that divides n so we can
    # avoid any host-side padding on the common path.
    lane = None
    for cand in (4096, 2048, 1024, 512, 256, 128):
        if n % cand == 0:
            lane = cand
            break

    x_flat = x.reshape(-1)
    padded = False
    if lane is None:
        # Rare ragged case: minimal pad to a multiple of 128, slice off at the end.
        lane = 128
        n_pad = (-n) % lane
        x_flat = jnp.pad(x_flat, (0, n_pad))
        padded = True

    rows = x_flat.size // lane
    x2d = x_flat.reshape(rows, lane)

    br = _pick_block_rows(rows, lane, itemsize, sub_mult, target_block_bytes, num_tc)
    # cdiv grid: Pallas masks the partial last block's writeback. Safe only because
    # this kernel is purely elementwise (garbage in OOB lanes is never written).
    grid = (pl.cdiv(rows, br),)

    kernel = functools.partial(_custom_relu_kernel, leak=leak, sub=sub)

    y2d = pl.pallas_call(
        kernel,
        out_shape=jax.ShapeDtypeStruct((rows, lane), dtype),
        grid_spec=pltpu.PrefetchScalarGridSpec(
            num_scalar_prefetch=0,
            grid=grid,
            in_specs=[pl.BlockSpec((br, lane), lambda i: (i, 0))],
            out_specs=pl.BlockSpec((br, lane), lambda i: (i, 0)),
        ),
        # Same dtype/shape in and out: alias so no extra output allocation and an
        # in-place overwrite when the caller donates the activation.
        input_output_aliases={0: 0},
        compiler_params=pltpu.CompilerParams(
            dimension_semantics=("parallel",),
            vmem_limit_bytes=vmem_limit_bytes,
        ),
    )(x2d)

    y_flat = y2d.reshape(-1)
    if padded:
        y_flat = y_flat[:n]
    return y_flat.reshape(orig_shape)


if __name__ == "__main__":
    key = jax.random.PRNGKey(0)
    # NCHW input, small shapes: batch=2, channels=4, spatial=16x16
    x = jax.random.normal(key, (2, 4, 16, 16), dtype=jnp.float32)

    # Case 1: plain ReLU (leak=None, sub=None)
    y0 = custom_relu(x, leak=None, sub=None)
    jax.block_until_ready(y0)
    ref0 = jnp.maximum(x, 0.0)
    assert jnp.allclose(y0, ref0, atol=1e-6), "relu mismatch"

    # Case 2: leaky ReLU with subtraction
    leak, sub = 0.1, 0.5
    y1 = custom_relu(x, leak=leak, sub=sub)
    jax.block_until_ready(y1)
    ref1 = jnp.where(x >= 0, x, leak * x) - sub
    assert jnp.allclose(y1, ref1, atol=1e-6), "leaky relu - sub mismatch"

    # Case 3: ragged size (exercises the rare pad fallback path)
    x_r = jax.random.normal(jax.random.PRNGKey(1), (3, 5, 7), dtype=jnp.float32)
    y2 = custom_relu(x_r, leak=0.2, sub=None)
    jax.block_until_ready(y2)
    ref2 = jnp.where(x_r >= 0, x_r, 0.2 * x_r)
    assert jnp.allclose(y2, ref2, atol=1e-6), "ragged leaky relu mismatch"

    # Case 4: multi-row slab (exercises the block-rebalancing path), still small.
    x_m = jax.random.normal(jax.random.PRNGKey(2), (8, 4, 64, 64), dtype=jnp.float32)
    y3 = custom_relu(x_m, leak=None, sub=0.25)
    jax.block_until_ready(y3)
    ref3 = jnp.maximum(x_m, 0.0) - 0.25
    assert jnp.allclose(y3, ref3, atol=1e-6), "relu - sub mismatch (multi-row)"

    print("KERNEL_OK")
</pallas_src>

<mosaic_0001>
module attributes {stable_mosaic.version = 11 : i64} {
  func.func @_custom_relu_kernel(%arg0: i32, %arg1: memref<1x2048xf32, #tpu.memory_space<vmem>>, %arg2: memref<1x2048xf32, #tpu.memory_space<vmem>>) attributes {dimension_semantics = [#tpu.dimension_semantics<parallel>], iteration_bounds = array<i64: 1>, scalar_prefetch = 0 : i64, scratch_operands = 0 : i64, tpu.core_type = #tpu.core_type<tc>, window_params = [{transform_indices = @transform_0, window_bounds = array<i64: 1, 2048>}, {transform_indices = @transform_1, window_bounds = array<i64: 1, 2048>}]} {
    %c0 = arith.constant 0 : index
    %c0_0 = arith.constant 0 : index
    %0 = vector.load %arg1[%c0, %c0_0] : memref<1x2048xf32, #tpu.memory_space<vmem>>, vector<1x2048xf32>
    %cst = arith.constant 0.000000e+00 : f32
    %1 = vector.broadcast %cst : f32 to vector<1x2048xf32>
    %2 = arith.maximumf %0, %1 : vector<1x2048xf32>
    %c0_1 = arith.constant 0 : index
    %c0_2 = arith.constant 0 : index
    %3 = vector.load %arg2[%c0_1, %c0_2] : memref<1x2048xf32, #tpu.memory_space<vmem>>, vector<1x2048xf32>
    tpu.vector_store %arg2[%c0_1, %c0_2], %2 {strides = array<i32>} : memref<1x2048xf32, #tpu.memory_space<vmem>>, vector<1x2048xf32>,
    return
  }
  func.func @transform_0(%arg0: i32) -> (i32, i32) {
    %c0_i32 = arith.constant 0 : i32
    %c0_i32_0 = arith.constant 0 : i32
    return %arg0, %c0_i32 : i32, i32
  }
  func.func @transform_1(%arg0: i32) -> (i32, i32) {
    %c0_i32 = arith.constant 0 : i32
    %c0_i32_0 = arith.constant 0 : i32
    return %arg0, %c0_i32 : i32, i32
  }
}

</mosaic_0001>

<llo_original>
// kernel: tpu_custom_call.1
$region0: #{tpu_custom_call.1}
  #allocation0 [shape = 'u32[]', space=smem, size = 0x4, offset = 0x4, fixed_abs, tag = 'smem constant byte address 0x4 - core index']
  #allocation1 [shape = 'u32[72,128]{1,0:T(1,128)}', space=vmem, size = 0x9000, scoped, tag = 'internal scratch']
  %s0 = inlined_call_operand.hbm [shape: f32[1,2048], index: 0, kind: input, shape index: {}, may-alias: {0,1}]
  %s1 = inlined_call_operand.hbm [shape: f32[1,2048], index: 1, kind: output, shape index: {}, may-alias: {0,1}]
  %s2 = sld [smem:[#allocation0]]
  $region18: #{tpu_custom_call.1} parent=0
    _
  %s4 = ssub.s32 1, %s2
  %s5 = scalar_select 0, %s4, %s2
  $region1: #{tpu_custom_call.1} parent=0
    #allocation2 [shape = 'u8[8192]{0}', space=vmem, size = 0x2000, scoped, tag = 'input window, operand 0, single buffered']
    #allocation3 [shape = 's32[1]{0}', space=sflag, size = 0x4, scoped, tag = 'scoped memory for tpu_custom_call.1']
    #allocation4 [shape = 's32[1]{0}', space=sflag, size = 0x4, scoped, tag = 'scoped memory for tpu_custom_call.1']
    #allocation5 [shape = 'u8[8192]{0}', space=vmem, size = 0x2000, scoped, tag = 'output window, operand 0, single buffered']
    %6 = vsyncpa [#allocation3], 0
    %7 = vsyncpa [#allocation4], 0
    // Predicated region
    $region2: #{tpu_custom_call.1} parent=1 // pred_check
      _
    $region3: #{tpu_custom_call.1} parent=1 // pred_check_branch
      %9 = sbr.rel (0) target = $region5
    $region4: #{tpu_custom_call.1} parent=1 // pred_region
      %11 = vsyncadd [#allocation3], 0
      %s13 = sshll.u32 %s0, 4
      %s14 = int_to_ptr.hbm [resolvable:$true] %s13
      %s15 = sshll.u32 [#allocation2], 4
      %s16 = int_to_ptr.vmem [resolvable:$true] %s15
      %18 = dma.hbm_to_vmem [thread:$0]  %s14, 256, %s16, [#allocation3]
    $region5: #{tpu_custom_call.1} parent=1 // pred_fallthru
      _
    // Predicated region
    $region6: #{tpu_custom_call.1} parent=1 // pred_check
      _
    $region7: #{tpu_custom_call.1} parent=1 // pred_check_branch
      %20 = sbr.rel (0) target = $region9
    $region8: #{tpu_custom_call.1} parent=1 // pred_region
      %22 = dma.done [#allocation3], 256
    $region9: #{tpu_custom_call.1} parent=1 // pred_fallthru
      _
    %v23 = vld [vmem:[#allocation2] sm:$0xff]
    %v24 = vld [vmem:[#allocation2 + $0x8] sm:$0xff]
    %v25 = vmax.f32 %v23, 0.0
    %v26 = vmax.f32 %v24, 0.0
    %27 = vst [vmem:[#allocation5] sm:$0xff] %v25
    %28 = vst [vmem:[#allocation5 + $0x8] sm:$0xff] %v26
    // Predicated region
    $region10: #{tpu_custom_call.1} parent=1 // pred_check
      _
    $region11: #{tpu_custom_call.1} parent=1 // pred_check_branch
      %30 = sbr.rel (0) target = $region13
    $region12: #{tpu_custom_call.1} parent=1 // pred_region
      %32 = vsyncadd [#allocation4], 0
      %s34 = sshll.u32 [#allocation5], 4
      %s35 = int_to_ptr.vmem [resolvable:$true] %s34
      %s36 = sshll.u32 %s1, 4
      %s37 = int_to_ptr.hbm [resolvable:$true] %s36
      %39 = dma.vmem_to_hbm [thread:$0]  %s35, 256, %s37, [#allocation4]
    $region13: #{tpu_custom_call.1} parent=1 // pred_fallthru
      _
    // Predicated region
    $region14: #{tpu_custom_call.1} parent=1 // pred_check
      _
    $region15: #{tpu_custom_call.1} parent=1 // pred_check_branch
      %41 = sbr.rel (0) target = $region17
    $region16: #{tpu_custom_call.1} parent=1 // pred_region
      %43 = dma.done [#allocation4], 256
    $region17: #{tpu_custom_call.1} parent=1 // pred_fallthru
      _
    %44 = vsyncpa [#allocation3], 1
    %45 = vsyncpa [#allocation4], 1

</llo_original>
